<compile_context>
chip_gen: v6e
topology: v6e:2x2x1
jax: 0.10.0
libtpu: 0.0.40
codegen_flags: <defaults>
</compile_context>

<pallas_src>
import functools
import math

import jax
import jax.numpy as jnp
from jax.experimental import pallas as pl
from jax.experimental.pallas import tpu as pltpu

_HALF_LOG_2PI = 0.5 * math.log(2.0 * math.pi)


def _aevb_kernel(x_ref, e_ref,
                 ew1_ref, eb1_ref, ew23_ref, eb23_ref,
                 dw1_ref, db1_ref, dw23_ref, db23_ref,
                 out_ref, *, const_per_block):
    mm_dtype = ew1_ref.dtype               # bf16 (or f32) MXU operand dtype

    x_in = x_ref[...]                      # (TB, S)  bf16 or f32 stream
    e_in = e_ref[...]                      # (TB, L)
    latent = e_in.shape[-1]
    sample = x_in.shape[-1]

    # f32 copies for elementwise math; MXU operand fed straight from the stream.
    x = x_in.astype(jnp.float32)
    e = e_in.astype(jnp.float32)
    x_mm = x_in if x_in.dtype == mm_dtype else x_in.astype(mm_dtype)

    # ---- encoder: GaussianMLP(sample_dim -> latent_dim) ---------------------
    h = jnp.tanh(
        jnp.dot(x_mm, ew1_ref[...],
                preferred_element_type=jnp.float32) + eb1_ref[...])
    enc = jnp.dot(h.astype(mm_dtype), ew23_ref[...],       # fused mu|logvar head
                  preferred_element_type=jnp.float32) + eb23_ref[...]
    mu_z = enc[:, :latent]
    log_var_z = enc[:, latent:]

    # ---- reparameterization: z = mu + exp(0.5 * logvar) * e -----------------
    s = jnp.exp(0.5 * log_var_z)           # reused below: exp(logvar) == s*s
    z = mu_z + s * e                       # (TB, L)

    # ---- decoder: GaussianMLP(latent_dim -> sample_dim) ---------------------
    h2 = jnp.tanh(
        jnp.dot(z.astype(mm_dtype), dw1_ref[...],
                preferred_element_type=jnp.float32) + db1_ref[...])
    dec = jnp.dot(h2.astype(mm_dtype), dw23_ref[...],      # fused, 2S = 128 lanes
                  preferred_element_type=jnp.float32) + db23_ref[...]
    mu_x = jax.nn.sigmoid(dec[:, :sample])
    log_var_x = dec[:, sample:]

    # ---- non-constant parts of log-likelihood and KL -------------------------
    # full log_prob_x = -0.5*log(2*pi) - 0.5*lv_x - 0.5*(x-mu)^2*exp(-lv_x)
    # full kl_row     = 0.5 * sum(1 + lv_z - mu_z^2 - exp(lv_z))
    # Constants (-S*0.5*log(2*pi) and +0.5*L per row) are folded into
    # const_per_block in the wrapper.
    diff = x - mu_x
    lp_terms = -0.5 * (log_var_x + diff * diff * jnp.exp(-log_var_x))   # (TB, S)
    kl_terms = log_var_z - mu_z * mu_z - s * s                          # (TB, L)

    block_sum = (jnp.sum(lp_terms, keepdims=True)
                 + 0.5 * jnp.sum(kl_terms, keepdims=True)
                 + const_per_block)                                     # (1, 1)
    out_ref[...] = block_sum.reshape(1, 1, 1)


def _pick_block_batch(batch, cap=4096):
    """Largest divisor of batch that is <= cap and a multiple of 8 (or batch)."""
    if batch <= cap:
        return batch
    d = cap - (cap % 8)
    while d >= 8:
        if batch % d == 0:
            return d
        d -= 8
    return batch   # fallback: single block


def aevb_forward(x, e, params, *, block_batch=None, use_bf16_matmul=True,
                 stream_inputs_bf16=True):
    """Returns the scalar variational lower bound (FreyFace branch of AEVB)."""
    batch, sample_dim = x.shape
    latent_dim = e.shape[1]
    hidden_dim = params["ew1"].shape[1]

    mm_dtype = jnp.bfloat16 if use_bf16_matmul else jnp.float32
    stream_dtype = jnp.bfloat16 if stream_inputs_bf16 else jnp.float32

    # Fuse paired head weights/biases (mu | log_var) and pre-cast MXU operands.
    ew1 = params["ew1"].astype(mm_dtype)
    dw1 = params["dw1"].astype(mm_dtype)
    ew23 = jnp.concatenate([params["ew2"], params["ew3"]], axis=1).astype(mm_dtype)
    dw23 = jnp.concatenate([params["dw2"], params["dw3"]], axis=1).astype(mm_dtype)
    eb1 = params["eb1"].astype(jnp.float32)
    db1 = params["db1"].astype(jnp.float32)
    eb23 = jnp.concatenate([params["eb2"], params["eb3"]], axis=1).astype(jnp.float32)
    db23 = jnp.concatenate([params["db2"], params["db3"]], axis=1).astype(jnp.float32)

    # Halve the dominant HBM stream (x) by casting in the wrapper.
    x_s = x.astype(stream_dtype)
    e_s = e.astype(stream_dtype)

    if block_batch is None:
        # ~4096 keeps live per-row intermediates well inside v7x's 32 MiB
        # scoped-VMEM default; v5e/v6e could go higher but this is safe per-gen.
        block_batch = _pick_block_batch(batch, cap=4096)
    assert batch % block_batch == 0, "batch must be divisible by block_batch"
    assert block_batch == batch or block_batch % 8 == 0, \
        "block_batch must be a multiple of 8 (sublane) or equal to batch"
    num_blocks = batch // block_batch

    # Constant part of (log_prob_x + kl) summed over one full block.
    const_per_block = float(block_batch) * (0.5 * latent_dim
                                            - sample_dim * _HALF_LOG_2PI)

    # Advisory cost estimate for XLA scheduling around the custom call.
    flops = 2 * batch * hidden_dim * 3 * (sample_dim + latent_dim)
    transcendentals = batch * (2 * hidden_dim + latent_dim + 2 * sample_dim)
    w_itemsize = jnp.dtype(mm_dtype).itemsize
    a_itemsize = jnp.dtype(stream_dtype).itemsize
    w_bytes = (ew1.size + ew23.size + dw1.size + dw23.size) * w_itemsize
    b_bytes = (eb1.size + eb23.size + db1.size + db23.size) * 4
    bytes_accessed = (x.size + e.size) * a_itemsize + w_bytes + b_bytes + 4 * num_blocks

    kernel = functools.partial(_aevb_kernel, const_per_block=const_per_block)

    partials = pl.pallas_call(
        kernel,
        out_shape=jax.ShapeDtypeStruct((num_blocks, 1, 1), jnp.float32),
        grid_spec=pltpu.PrefetchScalarGridSpec(
            num_scalar_prefetch=0,
            grid=(num_blocks,),
            in_specs=[
                # batch-blocked activations (streamed, typically bf16)
                pl.BlockSpec((block_batch, sample_dim), lambda i: (i, 0)),    # x
                pl.BlockSpec((block_batch, latent_dim), lambda i: (i, 0)),    # e
                # weights / biases: constant block index -> fetched once, resident
                pl.BlockSpec((sample_dim, hidden_dim), lambda i: (0, 0)),     # ew1
                pl.BlockSpec((1, hidden_dim), lambda i: (0, 0)),              # eb1
                pl.BlockSpec((hidden_dim, 2 * latent_dim), lambda i: (0, 0)), # ew2|ew3
                pl.BlockSpec((1, 2 * latent_dim), lambda i: (0, 0)),          # eb2|eb3
                pl.BlockSpec((latent_dim, hidden_dim), lambda i: (0, 0)),     # dw1
                pl.BlockSpec((1, hidden_dim), lambda i: (0, 0)),              # db1
                pl.BlockSpec((hidden_dim, 2 * sample_dim), lambda i: (0, 0)), # dw2|dw3
                pl.BlockSpec((1, 2 * sample_dim), lambda i: (0, 0)),          # db2|db3
            ],
            # independent per-block partial sums -> grid axis can be "parallel"
            out_specs=pl.BlockSpec((1, 1, 1), lambda i: (i, 0, 0)),
        ),
        compiler_params=pltpu.CompilerParams(
            dimension_semantics=("parallel",),
        ),
        cost_estimate=pl.CostEstimate(
            flops=flops,
            transcendentals=transcendentals,
            bytes_accessed=bytes_accessed,
        ),
    )(x_s, e_s, ew1, eb1, ew23, eb23, dw1, db1, dw23, db23)

    # Final batch mean (same f32 reduction tree regardless of grid scheduling).
    return jnp.sum(partials) / batch


def _init_params(key, sample_dim, latent_dim, hidden_dim):
    """Deterministic synthetic parameters (nn.Linear shapes, stored [in, out])."""
    def linear(k, fan_in, fan_out):
        kw, kb = jax.random.split(k)
        bound = 1.0 / jnp.sqrt(fan_in)
        w = jax.random.uniform(kw, (fan_in, fan_out), jnp.float32, -bound, bound)
        b = jax.random.uniform(kb, (1, fan_out), jnp.float32, -bound, bound)
        return w, b

    ks = jax.random.split(key, 6)
    p = {}
    # encoder GaussianMLP(sample_dim -> latent_dim, hidden_dim)
    p["ew1"], p["eb1"] = linear(ks[0], sample_dim, hidden_dim)
    p["ew2"], p["eb2"] = linear(ks[1], hidden_dim, latent_dim)
    p["ew3"], p["eb3"] = linear(ks[2], hidden_dim, latent_dim)
    # decoder GaussianMLP(latent_dim -> sample_dim, hidden_dim)   (FreyFace)
    p["dw1"], p["db1"] = linear(ks[3], latent_dim, hidden_dim)
    p["dw2"], p["db2"] = linear(ks[4], hidden_dim, sample_dim)
    p["dw3"], p["db3"] = linear(ks[5], hidden_dim, sample_dim)
    return p


def _reference_forward(x, e, p, mm_dtype=jnp.float32, input_dtype=jnp.float32):
    """Pure-JAX reference of AEVB.forward (FreyFace branch).

    `mm_dtype` / `input_dtype` match the kernel's MXU-operand and input-stream
    precisions so the matched comparison is apples-to-apples."""
    x = x.astype(input_dtype).astype(jnp.float32)
    e = e.astype(input_dtype).astype(jnp.float32)

    def dot(a, w):
        return jnp.dot(a.astype(mm_dtype), w.astype(mm_dtype),
                       preferred_element_type=jnp.float32)

    h = jnp.tanh(dot(x, p["ew1"]) + p["eb1"])
    mu_z = dot(h, p["ew2"]) + p["eb2"]
    lv_z = dot(h, p["ew3"]) + p["eb3"]
    z = mu_z + jnp.exp(0.5 * lv_z) * e
    h2 = jnp.tanh(dot(z, p["dw1"]) + p["db1"])
    mu_x = jax.nn.sigmoid(dot(h2, p["dw2"]) + p["db2"])
    lv_x = dot(h2, p["dw3"]) + p["db3"]
    log_prob_x = (-0.5 * jnp.log(2 * jnp.pi) - 0.5 * lv_x
                  - 0.5 * (x - mu_x) ** 2 / jnp.exp(lv_x)).sum(-1)
    kl = 0.5 * jnp.sum(1 + lv_z - mu_z ** 2 - jnp.exp(lv_z), axis=-1)
    return (kl + log_prob_x).mean()


if __name__ == "__main__":
    # Small, module-consistent shapes; batch=16 with block_batch=8 exercises
    # the (parallel) batch grid with 2 blocks and resident weights.
    batch, sample_dim, latent_dim, hidden_dim = 16, 64, 8, 32

    key = jax.random.PRNGKey(0)
    k_x, k_e, k_p = jax.random.split(key, 3)

    # x plays the role of flattened FreyFace pixels in [0, 1].
    x = jax.random.uniform(k_x, (batch, sample_dim), jnp.float32)
    # Reparameterization noise (torch.randn inside sample_z) passed explicitly
    # so the kernel is deterministic and checkable against the reference.
    e = jax.random.normal(k_e, (batch, latent_dim), jnp.float32)

    params = _init_params(k_p, sample_dim, latent_dim, hidden_dim)

    lb = aevb_forward(x, e, params, block_batch=8,
                      use_bf16_matmul=True, stream_inputs_bf16=True)
    jax.block_until_ready(lb)

    # Matched-precision reference (bf16 streamed inputs + bf16 MXU operands,
    # f32 accumulation / elementwise).
    ref_matched = _reference_forward(x, e, params,
                                     mm_dtype=jnp.bfloat16,
                                     input_dtype=jnp.bfloat16)
    # Full-f32 reference, looser tolerance (bf16 operand/input rounding).
    ref_f32 = _reference_forward(x, e, params)

    assert jnp.allclose(lb, ref_matched, rtol=5e-3, atol=5e-3), (lb, ref_matched)
    assert jnp.allclose(lb, ref_f32, rtol=5e-2, atol=5e-2), (lb, ref_f32)

    print("KERNEL_OK")
</pallas_src>

<mosaic_0001>
module attributes {stable_mosaic.version = 11 : i64} {
  func.func @_aevb_kernel(%arg0: i32, %arg1: memref<8x64xbf16, #tpu.memory_space<vmem>>, %arg2: memref<8x8xbf16, #tpu.memory_space<vmem>>, %arg3: memref<64x32xbf16, #tpu.memory_space<vmem>>, %arg4: memref<1x32xf32, #tpu.memory_space<vmem>>, %arg5: memref<32x16xbf16, #tpu.memory_space<vmem>>, %arg6: memref<1x16xf32, #tpu.memory_space<vmem>>, %arg7: memref<8x32xbf16, #tpu.memory_space<vmem>>, %arg8: memref<1x32xf32, #tpu.memory_space<vmem>>, %arg9: memref<32x128xbf16, #tpu.memory_space<vmem>>, %arg10: memref<1x128xf32, #tpu.memory_space<vmem>>, %arg11: memref<1x1x1xf32, #tpu.memory_space<vmem>>) attributes {dimension_semantics = [#tpu.dimension_semantics<parallel>], iteration_bounds = array<i64: 2>, scalar_prefetch = 0 : i64, scratch_operands = 0 : i64, tpu.core_type = #tpu.core_type<tc>, window_params = [{transform_indices = @transform_0, window_bounds = array<i64: 8, 64>}, {transform_indices = @transform_1, window_bounds = array<i64: 8, 8>}, {pipeline_mode = #tpu.pipeline_mode<synchronous>, transform_indices = @transform_2, window_bounds = array<i64: 64, 32>}, {pipeline_mode = #tpu.pipeline_mode<synchronous>, transform_indices = @transform_3, window_bounds = array<i64: 1, 32>}, {pipeline_mode = #tpu.pipeline_mode<synchronous>, transform_indices = @transform_4, window_bounds = array<i64: 32, 16>}, {pipeline_mode = #tpu.pipeline_mode<synchronous>, transform_indices = @transform_5, window_bounds = array<i64: 1, 16>}, {pipeline_mode = #tpu.pipeline_mode<synchronous>, transform_indices = @transform_6, window_bounds = array<i64: 8, 32>}, {pipeline_mode = #tpu.pipeline_mode<synchronous>, transform_indices = @transform_7, window_bounds = array<i64: 1, 32>}, {pipeline_mode = #tpu.pipeline_mode<synchronous>, transform_indices = @transform_8, window_bounds = array<i64: 32, 128>}, {pipeline_mode = #tpu.pipeline_mode<synchronous>, transform_indices = @transform_9, window_bounds = array<i64: 1, 128>}, {transform_indices = @transform_10, window_bounds = array<i64: 1, 1, 1>}]} {
    %c0 = arith.constant 0 : index
    %c0_0 = arith.constant 0 : index
    %0 = vector.load %arg1[%c0, %c0_0] : memref<8x64xbf16, #tpu.memory_space<vmem>>, vector<8x64xbf16>
    %c0_1 = arith.constant 0 : index
    %c0_2 = arith.constant 0 : index
    %1 = vector.load %arg2[%c0_1, %c0_2] : memref<8x8xbf16, #tpu.memory_space<vmem>>, vector<8x8xbf16>
    %2 = arith.extf %0 : vector<8x64xbf16> to vector<8x64xf32>
    %3 = arith.extf %1 : vector<8x8xbf16> to vector<8x8xf32>
    %c0_3 = arith.constant 0 : index
    %c0_4 = arith.constant 0 : index
    %4 = vector.load %arg3[%c0_3, %c0_4] : memref<64x32xbf16, #tpu.memory_space<vmem>>, vector<64x32xbf16>
    %cst = arith.constant dense<0.000000e+00> : vector<8x32xf32>
    %5 = tpu.matmul %0, %4, %cst {dimension_numbers = #tpu.dot_dimension_numbers<[1], [0], [0], [1], [0, 0, 1, 1], [], []>} : vector<8x64xbf16>, vector<64x32xbf16>, vector<8x32xf32> -> vector<8x32xf32>
    %c0_5 = arith.constant 0 : index
    %c0_6 = arith.constant 0 : index
    %6 = vector.load %arg4[%c0_5, %c0_6] : memref<1x32xf32, #tpu.memory_space<vmem>>, vector<1x32xf32>
    %7 = vector.broadcast %6 : vector<1x32xf32> to vector<8x32xf32>
    %8 = arith.addf %5, %7 : vector<8x32xf32>
    %9 = math.tanh %8 : vector<8x32xf32>
    %10 = arith.truncf %9 : vector<8x32xf32> to vector<8x32xbf16>
    %c0_7 = arith.constant 0 : index
    %c0_8 = arith.constant 0 : index
    %11 = vector.load %arg5[%c0_7, %c0_8] : memref<32x16xbf16, #tpu.memory_space<vmem>>, vector<32x16xbf16>
    %cst_9 = arith.constant dense<0.000000e+00> : vector<8x16xf32>
    %12 = tpu.matmul %10, %11, %cst_9 {dimension_numbers = #tpu.dot_dimension_numbers<[1], [0], [0], [1], [0, 0, 1, 1], [], []>} : vector<8x32xbf16>, vector<32x16xbf16>, vector<8x16xf32> -> vector<8x16xf32>
    %c0_10 = arith.constant 0 : index
    %c0_11 = arith.constant 0 : index
    %13 = vector.load %arg6[%c0_10, %c0_11] : memref<1x16xf32, #tpu.memory_space<vmem>>, vector<1x16xf32>
    %14 = vector.broadcast %13 : vector<1x16xf32> to vector<8x16xf32>
    %15 = arith.addf %12, %14 : vector<8x16xf32>
    %16 = vector.extract_strided_slice %15 {offsets = [0, 0], sizes = [8, 8], strides = [1, 1]} : vector<8x16xf32> to vector<8x8xf32>
    %17 = vector.extract_strided_slice %15 {offsets = [0, 8], sizes = [8, 8], strides = [1, 1]} : vector<8x16xf32> to vector<8x8xf32>
    %cst_12 = arith.constant 5.000000e-01 : f32
    %18 = vector.broadcast %cst_12 : f32 to vector<8x8xf32>
    %19 = arith.mulf %18, %17 : vector<8x8xf32>
    %20 = math.exp %19 : vector<8x8xf32>
    %21 = arith.mulf %20, %3 : vector<8x8xf32>
    %22 = arith.addf %16, %21 : vector<8x8xf32>
    %23 = arith.truncf %22 : vector<8x8xf32> to vector<8x8xbf16>
    %c0_13 = arith.constant 0 : index
    %c0_14 = arith.constant 0 : index
    %24 = vector.load %arg7[%c0_13, %c0_14] : memref<8x32xbf16, #tpu.memory_space<vmem>>, vector<8x32xbf16>
    %cst_15 = arith.constant dense<0.000000e+00> : vector<8x32xf32>
    %25 = tpu.matmul %23, %24, %cst_15 {dimension_numbers = #tpu.dot_dimension_numbers<[1], [0], [0], [1], [0, 0, 1, 1], [], []>} : vector<8x8xbf16>, vector<8x32xbf16>, vector<8x32xf32> -> vector<8x32xf32>
    %c0_16 = arith.constant 0 : index
    %c0_17 = arith.constant 0 : index
    %26 = vector.load %arg8[%c0_16, %c0_17] : memref<1x32xf32, #tpu.memory_space<vmem>>, vector<1x32xf32>
    %27 = vector.broadcast %26 : vector<1x32xf32> to vector<8x32xf32>
    %28 = arith.addf %25, %27 : vector<8x32xf32>
    %29 = math.tanh %28 : vector<8x32xf32>
    %30 = arith.truncf %29 : vector<8x32xf32> to vector<8x32xbf16>
    %c0_18 = arith.constant 0 : index
    %c0_19 = arith.constant 0 : index
    %31 = vector.load %arg9[%c0_18, %c0_19] : memref<32x128xbf16, #tpu.memory_space<vmem>>, vector<32x128xbf16>
    %cst_20 = arith.constant dense<0.000000e+00> : vector<8x128xf32>
    %32 = tpu.matmul %30, %31, %cst_20 {dimension_numbers = #tpu.dot_dimension_numbers<[1], [0], [0], [1], [0, 0, 1, 1], [], []>} : vector<8x32xbf16>, vector<32x128xbf16>, vector<8x128xf32> -> vector<8x128xf32>
    %c0_21 = arith.constant 0 : index
    %c0_22 = arith.constant 0 : index
    %33 = vector.load %arg10[%c0_21, %c0_22] : memref<1x128xf32, #tpu.memory_space<vmem>>, vector<1x128xf32>
    %34 = vector.broadcast %33 : vector<1x128xf32> to vector<8x128xf32>
    %35 = arith.addf %32, %34 : vector<8x128xf32>
    %36 = vector.extract_strided_slice %35 {offsets = [0, 0], sizes = [8, 64], strides = [1, 1]} : vector<8x128xf32> to vector<8x64xf32>
    %37 = arith.negf %36 : vector<8x64xf32>
    %38 = math.exp %37 : vector<8x64xf32>
    %cst_23 = arith.constant 1.000000e+00 : f32
    %39 = vector.broadcast %cst_23 : f32 to vector<8x64xf32>
    %40 = arith.addf %39, %38 : vector<8x64xf32>
    %41 = arith.divf %39, %40 : vector<8x64xf32>
    %42 = vector.extract_strided_slice %35 {offsets = [0, 64], sizes = [8, 64], strides = [1, 1]} : vector<8x128xf32> to vector<8x64xf32>
    %43 = arith.subf %2, %41 : vector<8x64xf32>
    %44 = arith.mulf %43, %43 : vector<8x64xf32>
    %cst_24 = arith.constant 0.000000e+00 : f32
    %45 = vector.broadcast %cst_24 : f32 to vector<8x64xf32>
    %46 = arith.subf %45, %42 : vector<8x64xf32>
    %47 = math.exp %46 : vector<8x64xf32>
    %48 = arith.mulf %44, %47 : vector<8x64xf32>
    %49 = arith.addf %42, %48 : vector<8x64xf32>
    %cst_25 = arith.constant -5.000000e-01 : f32
    %50 = vector.broadcast %cst_25 : f32 to vector<8x64xf32>
    %51 = arith.mulf %50, %49 : vector<8x64xf32>
    %52 = arith.mulf %16, %16 : vector<8x8xf32>
    %53 = arith.subf %17, %52 : vector<8x8xf32>
    %54 = arith.mulf %20, %20 : vector<8x8xf32>
    %55 = arith.subf %53, %54 : vector<8x8xf32>
    %56 = vector.shape_cast %51 : vector<8x64xf32> to vector<1x8x64xf32>
    %cst_26 = arith.constant dense<0.000000e+00> : vector<1xf32>
    %57 = vector.multi_reduction <add>, %56, %cst_26 [1, 2] : vector<1x8x64xf32> to vector<1xf32>
    %58 = vector.shape_cast %57 : vector<1xf32> to vector<1x1x1xf32>
    %59 = vector.extract %58[0, 0, 0] : f32 from vector<1x1x1xf32>
    %60 = vector.broadcast %59 : f32 to vector<1x1xf32>
    %61 = vector.shape_cast %55 : vector<8x8xf32> to vector<1x8x8xf32>
    %cst_27 = arith.constant dense<0.000000e+00> : vector<1xf32>
    %62 = vector.multi_reduction <add>, %61, %cst_27 [1, 2] : vector<1x8x8xf32> to vector<1xf32>
    %63 = vector.shape_cast %62 : vector<1xf32> to vector<1x1x1xf32>
    %64 = vector.extract %63[0, 0, 0] : f32 from vector<1x1x1xf32>
    %65 = vector.broadcast %64 : f32 to vector<1x1xf32>
    %cst_28 = arith.constant 5.000000e-01 : f32
    %66 = vector.broadcast %cst_28 : f32 to vector<1x1xf32>
    %67 = arith.mulf %66, %65 : vector<1x1xf32>
    %68 = arith.addf %60, %67 : vector<1x1xf32>
    %cst_29 = arith.constant -438.496521 : f32
    %69 = vector.broadcast %cst_29 : f32 to vector<1x1xf32>
    %70 = arith.addf %68, %69 : vector<1x1xf32>
    %71 = vector.shape_cast %70 : vector<1x1xf32> to vector<1x1x1xf32>
    %c0_30 = arith.constant 0 : index
    %c0_31 = arith.constant 0 : index
    %c0_32 = arith.constant 0 : index
    %72 = vector.load %arg11[%c0_30, %c0_31, %c0_32] : memref<1x1x1xf32, #tpu.memory_space<vmem>>, vector<1x1x1xf32>
    tpu.vector_store %arg11[%c0_30, %c0_31, %c0_32], %71 {strides = array<i32>} : memref<1x1x1xf32, #tpu.memory_space<vmem>>, vector<1x1x1xf32>,
    return
  }
  func.func @transform_0(%arg0: i32) -> (i32, i32) {
    %c0_i32 = arith.constant 0 : i32
    %c0_i32_0 = arith.constant 0 : i32
    return %arg0, %c0_i32 : i32, i32
  }
  func.func @transform_1(%arg0: i32) -> (i32, i32) {
    %c0_i32 = arith.constant 0 : i32
    %c0_i32_0 = arith.constant 0 : i32
    return %arg0, %c0_i32 : i32, i32
  }
  func.func @transform_2(%arg0: i32) -> (i32, i32) {
    %c0_i32 = arith.constant 0 : i32
    %c0_i32_0 = arith.constant 0 : i32
    %c0_i32_1 = arith.constant 0 : i32
    return %c0_i32, %c0_i32_0 : i32, i32
  }
  func.func @transform_3(%arg0: i32) -> (i32, i32) {
    %c0_i32 = arith.constant 0 : i32
    %c0_i32_0 = arith.constant 0 : i32
    %c0_i32_1 = arith.constant 0 : i32
    return %c0_i32, %c0_i32_0 : i32, i32
  }
  func.func @transform_4(%arg0: i32) -> (i32, i32) {
    %c0_i32 = arith.constant 0 : i32
    %c0_i32_0 = arith.constant 0 : i32
    %c0_i32_1 = arith.constant 0 : i32
    return %c0_i32, %c0_i32_0 : i32, i32
  }
  func.func @transform_5(%arg0: i32) -> (i32, i32) {
    %c0_i32 = arith.constant 0 : i32
    %c0_i32_0 = arith.constant 0 : i32
    %c0_i32_1 = arith.constant 0 : i32
    return %c0_i32, %c0_i32_0 : i32, i32
  }
  func.func @transform_6(%arg0: i32) -> (i32, i32) {
    %c0_i32 = arith.constant 0 : i32
    %c0_i32_0 = arith.constant 0 : i32
    %c0_i32_1 = arith.constant 0 : i32
    return %c0_i32, %c0_i32_0 : i32, i32
  }
  func.func @transform_7(%arg0: i32) -> (i32, i32) {
    %c0_i32 = arith.constant 0 : i32
    %c0_i32_0 = arith.constant 0 : i32
    %c0_i32_1 = arith.constant 0 : i32
    return %c0_i32, %c0_i32_0 : i32, i32
  }
  func.func @transform_8(%arg0: i32) -> (i32, i32) {
    %c0_i32 = arith.constant 0 : i32
    %c0_i32_0 = arith.constant 0 : i32
    %c0_i32_1 = arith.constant 0 : i32
    return %c0_i32, %c0_i32_0 : i32, i32
  }
  func.func @transform_9(%arg0: i32) -> (i32, i32) {
    %c0_i32 = arith.constant 0 : i32
    %c0_i32_0 = arith.constant 0 : i32
    %c0_i32_1 = arith.constant 0 : i32
    return %c0_i32, %c0_i32_0 : i32, i32
  }
  func.func @transform_10(%arg0: i32) -> (i32, i32, i32) {
    %c0_i32 = arith.constant 0 : i32
    %c0_i32_0 = arith.constant 0 : i32
    %c0_i32_1 = arith.constant 0 : i32
    return %arg0, %c0_i32, %c0_i32_0 : i32, i32, i32
  }
}

</mosaic_0001>

<llo_original>
// kernel: tpu_custom_call.1
$region0: #{tpu_custom_call.1}
  #allocation0 [shape = 'u32[]', space=smem, size = 0x4, offset = 0x4, fixed_abs, tag = 'smem constant byte address 0x4 - core index']
  #allocation1 [shape = 'u32[144,128]{1,0:T(1,128)}', space=vmem, size = 0x12000, scoped, tag = 'internal scratch']
  %s0 = inlined_call_operand.vmem [shape: bf16[16,64], index: 0, kind: input, shape index: {}]
  %s1 = inlined_call_operand.vmem [shape: bf16[16,8], index: 1, kind: input, shape index: {}]
  %s2 = inlined_call_operand.vmem [shape: bf16[64,32], index: 2, kind: input, shape index: {}]
  %s3 = inlined_call_operand.vmem [shape: f32[1,32], index: 3, kind: input, shape index: {}]
  %s4 = inlined_call_operand.vmem [shape: bf16[32,16], index: 4, kind: input, shape index: {}]
  %s5 = inlined_call_operand.vmem [shape: f32[1,16], index: 5, kind: input, shape index: {}]
  %s6 = inlined_call_operand.vmem [shape: bf16[8,32], index: 6, kind: input, shape index: {}]
  %s7 = inlined_call_operand.vmem [shape: f32[1,32], index: 7, kind: input, shape index: {}]
  %s8 = inlined_call_operand.vmem [shape: bf16[32,128], index: 8, kind: input, shape index: {}]
  %s9 = inlined_call_operand.vmem [shape: f32[1,128], index: 9, kind: input, shape index: {}]
  %s10 = inlined_call_operand.vmem [shape: f32[2,1,1], index: 10, kind: output, shape index: {}]
  %s11 = sld [smem:[#allocation0]]
  $region73: #{tpu_custom_call.1} parent=0
    _
  %s13 = ssub.s32 1, %s11
  %s14 = scalar_select 0, %s13, %s11
  loop: start=0, step=1, limit=4
  $region2: #{tpu_custom_call.1} parent=0 // loop_pre_header
    _
  $region3: #{tpu_custom_call.1} parent=0 // loop_header
    %s16 = sphi 0, %s20
    %p17 = scmp.ge.s32.totalorder %s16, 4
    %s26 = sphi 0, %s28
    %s29 = sphi 0, %s26
    %s30 = sphi 0, %s29
    %s46 = sphi 0, %s30
    %s52 = sphi 0, %s54
    %s55 = sphi 0, %s52
    %s56 = sphi 0, %s55
    %s72 = sphi 0, %s56
    %s76 = sphi 0, %s76
    %s78 = sphi 0, %s76
    %s79 = sphi 0, %s78
    %s93 = sphi 0, %s79
    %s97 = sphi 0, %s97
    %s99 = sphi 0, %s97
    %s100 = sphi 0, %s99
    %s114 = sphi 0, %s100
    %s118 = sphi 0, %s118
    %s120 = sphi 0, %s118
    %s121 = sphi 0, %s120
    %s135 = sphi 0, %s121
    %s139 = sphi 0, %s139
    %s141 = sphi 0, %s139
    %s142 = sphi 0, %s141
    %s156 = sphi 0, %s142
    %s160 = sphi 0, %s160
    %s162 = sphi 0, %s160
    %s163 = sphi 0, %s162
    %s177 = sphi 0, %s163
    %s181 = sphi 0, %s181
    %s183 = sphi 0, %s181
    %s184 = sphi 0, %s183
    %s198 = sphi 0, %s184
    %s202 = sphi 0, %s202
    %s204 = sphi 0, %s202
    %s205 = sphi 0, %s204
    %s219 = sphi 0, %s205
    %s223 = sphi 0, %s223
    %s225 = sphi 0, %s223
    %s226 = sphi 0, %s225
    %s240 = sphi 0, %s226
    %s246 = sphi 0, %s248
    %s249 = sphi 0, %s246
    %s250 = sphi 0, %s249
    %s266 = sphi 0, %s250
  $region4: #{tpu_custom_call.1} parent=0 // loop_header_branch
    %19 = sbr.rel (%p17) target = $region8
  $region5: #{tpu_custom_call.1} parent=0 // loop_body
    %s21 = ssub.s32 %s16, 1
    %s22 = ssub.s32 %s16, 2
    %s23 = sadd.s32 %s16, 1
    %s24 = ssub.s32 %s16, %s23
    %p25 = scmp.eq.s32.totalorder %s24, 0
    %s27 = sadd.s32 %s26, 1
    %s28 = scalar_select %p25, %s26, %s27
    %p31 = pneg %p25
    %p32 = scmp.eq.s32.totalorder %s16, 1
    %p33 = por %p31, %p32
    %p34 = scmp.ne.s32.totalorder %s26, %s29
    %p35 = scmp.eq.s32.totalorder %s16, 0
    %p36 = por %p34, %p35
    %p37 = scmp.ne.s32.totalorder %s26, %s29
    %p38 = scmp.eq.s32.totalorder %s21, 1
    %p39 = por %p37, %p38
    %p40 = scmp.ne.s32.totalorder %s29, %s30
    %p41 = scmp.eq.s32.totalorder %s21, 0
    %p42 = por %p40, %p41
    %p43 = scmp.ne.s32.totalorder %s29, %s30
    %p44 = scmp.eq.s32.totalorder %s22, 1
    %p45 = por %p43, %p44
    %p47 = scmp.ne.s32.totalorder %s30, %s46
    %p48 = scmp.eq.s32.totalorder %s22, 0
    %p49 = por %p47, %p48
    %s50 = ssub.s32 %s16, %s23
    %p51 = scmp.eq.s32.totalorder %s50, 0
    %s53 = sadd.s32 %s52, 1
    %s54 = scalar_select %p51, %s52, %s53
    %p57 = pneg %p51
    %p58 = scmp.eq.s32.totalorder %s16, 1
    %p59 = por %p57, %p58
    %p60 = scmp.ne.s32.totalorder %s52, %s55
    %p61 = scmp.eq.s32.totalorder %s16, 0
    %p62 = por %p60, %p61
    %p63 = scmp.ne.s32.totalorder %s52, %s55
    %p64 = scmp.eq.s32.totalorder %s21, 1
    %p65 = por %p63, %p64
    %p66 = scmp.ne.s32.totalorder %s55, %s56
    %p67 = scmp.eq.s32.totalorder %s21, 0
    %p68 = por %p66, %p67
    %p69 = scmp.ne.s32.totalorder %s55, %s56
    %p70 = scmp.eq.s32.totalorder %s22, 1
    %p71 = por %p69, %p70
    %p73 = scmp.ne.s32.totalorder %s56, %s72
    %p74 = scmp.eq.s32.totalorder %s22, 0
    %p75 = por %p73, %p74
    %s77 = sadd.s32 %s76, 1
    %p80 = scmp.eq.s32.totalorder %s16, 1
    %p81 = scmp.ne.s32.totalorder %s76, %s78
    %p82 = scmp.eq.s32.totalorder %s16, 0
    %p83 = por %p81, %p82
    %p84 = scmp.ne.s32.totalorder %s76, %s78
    %p85 = scmp.eq.s32.totalorder %s21, 1
    %p86 = por %p84, %p85
    %p87 = scmp.ne.s32.totalorder %s78, %s79
    %p88 = scmp.eq.s32.totalorder %s21, 0
    %p89 = por %p87, %p88
    %p90 = scmp.ne.s32.totalorder %s78, %s79
    %p91 = scmp.eq.s32.totalorder %s22, 1
    %p92 = por %p90, %p91
    %p94 = scmp.ne.s32.totalorder %s79, %s93
    %p95 = scmp.eq.s32.totalorder %s22, 0
    %p96 = por %p94, %p95
    %s98 = sadd.s32 %s97, 1
    %p101 = scmp.eq.s32.totalorder %s16, 1
    %p102 = scmp.ne.s32.totalorder %s97, %s99
    %p103 = scmp.eq.s32.totalorder %s16, 0
    %p104 = por %p102, %p103
    %p105 = scmp.ne.s32.totalorder %s97, %s99
    %p106 = scmp.eq.s32.totalorder %s21, 1
    %p107 = por %p105, %p106
    %p108 = scmp.ne.s32.totalorder %s99, %s100
    %p109 = scmp.eq.s32.totalorder %s21, 0
    %p110 = por %p108, %p109
    %p111 = scmp.ne.s32.totalorder %s99, %s100
    %p112 = scmp.eq.s32.totalorder %s22, 1
    %p113 = por %p111, %p112
    %p115 = scmp.ne.s32.totalorder %s100, %s114
    %p116 = scmp.eq.s32.totalorder %s22, 0
    %p117 = por %p115, %p116
    %s119 = sadd.s32 %s118, 1
    %p122 = scmp.eq.s32.totalorder %s16, 1
    %p123 = scmp.ne.s32.totalorder %s118, %s120
    %p124 = scmp.eq.s32.totalorder %s16, 0
    %p125 = por %p123, %p124
    %p126 = scmp.ne.s32.totalorder %s118, %s120
    %p127 = scmp.eq.s32.totalorder %s21, 1
    %p128 = por %p126, %p127
    %p129 = scmp.ne.s32.totalorder %s120, %s121
    %p130 = scmp.eq.s32.totalorder %s21, 0
    %p131 = por %p129, %p130
    %p132 = scmp.ne.s32.totalorder %s120, %s121
    %p133 = scmp.eq.s32.totalorder %s22, 1
    %p134 = por %p132, %p133
    %p136 = scmp.ne.s32.totalorder %s121, %s135
    %p137 = scmp.eq.s32.totalorder %s22, 0
    %p138 = por %p136, %p137
    %s140 = sadd.s32 %s139, 1
    %p143 = scmp.eq.s32.totalorder %s16, 1
    %p144 = scmp.ne.s32.totalorder %s139, %s141
    %p145 = scmp.eq.s32.totalorder %s16, 0
    %p146 = por %p144, %p145
    %p147 = scmp.ne.s32.totalorder %s139, %s141
    %p148 = scmp.eq.s32.totalorder %s21, 1
    %p149 = por %p147, %p148
    %p150 = scmp.ne.s32.totalorder %s141, %s142
    %p151 = scmp.eq.s32.totalorder %s21, 0
    %p152 = por %p150, %p151
    %p153 = scmp.ne.s32.totalorder %s141, %s142
    %p154 = scmp.eq.s32.totalorder %s22, 1
    %p155 = por %p153, %p154
    %p157 = scmp.ne.s32.totalorder %s142, %s156
    %p158 = scmp.eq.s32.totalorder %s22, 0
    %p159 = por %p157, %p158
    %s161 = sadd.s32 %s160, 1
    %p164 = scmp.eq.s32.totalorder %s16, 1
    %p165 = scmp.ne.s32.totalorder %s160, %s162
    %p166 = scmp.eq.s32.totalorder %s16, 0
    %p167 = por %p165, %p166
    %p168 = scmp.ne.s32.totalorder %s160, %s162
    %p169 = scmp.eq.s32.totalorder %s21, 1
    %p170 = por %p168, %p169
    %p171 = scmp.ne.s32.totalorder %s162, %s163
    %p172 = scmp.eq.s32.totalorder %s21, 0
    %p173 = por %p171, %p172
    %p174 = scmp.ne.s32.totalorder %s162, %s163
    %p175 = scmp.eq.s32.totalorder %s22, 1
    %p176 = por %p174, %p175
    %p178 = scmp.ne.s32.totalorder %s163, %s177
    %p179 = scmp.eq.s32.totalorder %s22, 0
    %p180 = por %p178, %p179
    %s182 = sadd.s32 %s181, 1
    %p185 = scmp.eq.s32.totalorder %s16, 1
    %p186 = scmp.ne.s32.totalorder %s181, %s183
    %p187 = scmp.eq.s32.totalorder %s16, 0
    %p188 = por %p186, %p187
    %p189 = scmp.ne.s32.totalorder %s181, %s183
    %p190 = scmp.eq.s32.totalorder %s21, 1
    %p191 = por %p189, %p190
    %p192 = scmp.ne.s32.totalorder %s183, %s184
    %p193 = scmp.eq.s32.totalorder %s21, 0
    %p194 = por %p192, %p193
    %p195 = scmp.ne.s32.totalorder %s183, %s184
    %p196 = scmp.eq.s32.totalorder %s22, 1
    %p197 = por %p195, %p196
    %p199 = scmp.ne.s32.totalorder %s184, %s198
    %p200 = scmp.eq.s32.totalorder %s22, 0
    %p201 = por %p199, %p200
    %s203 = sadd.s32 %s202, 1
    %p206 = scmp.eq.s32.totalorder %s16, 1
    %p207 = scmp.ne.s32.totalorder %s202, %s204
    %p208 = scmp.eq.s32.totalorder %s16, 0
    %p209 = por %p207, %p208
    %p210 = scmp.ne.s32.totalorder %s202, %s204
    %p211 = scmp.eq.s32.totalorder %s21, 1
    %p212 = por %p210, %p211
    %p213 = scmp.ne.s32.totalorder %s204, %s205
    %p214 = scmp.eq.s32.totalorder %s21, 0
    %p215 = por %p213, %p214
    %p216 = scmp.ne.s32.totalorder %s204, %s205
    %p217 = scmp.eq.s32.totalorder %s22, 1
    %p218 = por %p216, %p217
    %p220 = scmp.ne.s32.totalorder %s205, %s219
    %p221 = scmp.eq.s32.totalorder %s22, 0
    %p222 = por %p220, %p221
    %s224 = sadd.s32 %s223, 1
    %p227 = scmp.eq.s32.totalorder %s16, 1
    %p228 = scmp.ne.s32.totalorder %s223, %s225
    %p229 = scmp.eq.s32.totalorder %s16, 0
    %p230 = por %p228, %p229
    %p231 = scmp.ne.s32.totalorder %s223, %s225
    %p232 = scmp.eq.s32.totalorder %s21, 1
    %p233 = por %p231, %p232
    %p234 = scmp.ne.s32.totalorder %s225, %s226
    %p235 = scmp.eq.s32.totalorder %s21, 0
    %p236 = por %p234, %p235
    %p237 = scmp.ne.s32.totalorder %s225, %s226
    %p238 = scmp.eq.s32.totalorder %s22, 1
    %p239 = por %p237, %p238
    %p241 = scmp.ne.s32.totalorder %s226, %s240
    %p242 = scmp.eq.s32.totalorder %s22, 0
    %p243 = por %p241, %p242
    %s244 = ssub.s32 %s16, %s23
    %p245 = scmp.eq.s32.totalorder %s244, 0
    %s247 = sadd.s32 %s246, 1
    %s248 = scalar_select %p245, %s246, %s247
    %p251 = pneg %p245
    %p252 = scmp.eq.s32.totalorder %s16, 1
    %p253 = por %p251, %p252
    %p254 = scmp.ne.s32.totalorder %s246, %s249
    %p255 = scmp.eq.s32.totalorder %s16, 0
    %p256 = por %p254, %p255
    %p257 = scmp.ne.s32.totalorder %s246, %s249
    %p258 = scmp.eq.s32.totalorder %s21, 1
    %p259 = por %p257, %p258
    %p260 = scmp.ne.s32.totalorder %s249, %s250
    %p261 = scmp.eq.s32.totalorder %s21, 0
    %p262 = por %p260, %p261
    %p263 = scmp.ne.s32.totalorder %s249, %s250
    %p264 = scmp.eq.s32.totalorder %s22, 1
    %p265 = por %p263, %p264
    %p267 = scmp.ne.s32.totalorder %s250, %s266
    %p268 = scmp.eq.s32.totalorder %s22, 0
    %p269 = por %p267, %p268
    %p270 = scmp.le.s32.totalorder 1, %s16
    %p271 = scmp.lt.s32.totalorder %s16, 3
    %p272 = pnand %p270, %p271
    %p273 = pneg %p272
    // Predicated region
    $region9: #{tpu_custom_call.1} parent=5 // pred_check
      _
    $region10: #{tpu_custom_call.1} parent=5 // pred_check_branch
      %275 = sbr.rel (%p272) target = $region12
    $region11: #{tpu_custom_call.1} parent=5 // pred_region
      %s276 = ssub.s32 %s16, 1
      // Predicated region
      $region13: #{tpu_custom_call.1} parent=11 // pred_check
        %p277 = pneg %p89
      $region14: #{tpu_custom_call.1} parent=11 // pred_check_branch
        %279 = sbr.rel (%p277) target = $region16
      $region15: #{tpu_custom_call.1} parent=11 // pred_region
        _
      $region16: #{tpu_custom_call.1} parent=11 // pred_fallthru
        _
      // Predicated region
      $region17: #{tpu_custom_call.1} parent=11 // pred_check
        %p280 = pneg %p110
      $region18: #{tpu_custom_call.1} parent=11 // pred_check_branch
        %282 = sbr.rel (%p280) target = $region20
      $region19: #{tpu_custom_call.1} parent=11 // pred_region
        _
      $region20: #{tpu_custom_call.1} parent=11 // pred_fallthru
        _
      // Predicated region
      $region21: #{tpu_custom_call.1} parent=11 // pred_check
        %p283 = pneg %p131
      $region22: #{tpu_custom_call.1} parent=11 // pred_check_branch
        %285 = sbr.rel (%p283) target = $region24
      $region23: #{tpu_custom_call.1} parent=11 // pred_region
        _
      $region24: #{tpu_custom_call.1} parent=11 // pred_fallthru
        _
      // Predicated region
      $region25: #{tpu_custom_call.1} parent=11 // pred_check
        %p286 = pneg %p152
      $region26: #{tpu_custom_call.1} parent=11 // pred_check_branch
        %288 = sbr.rel (%p286) target = $region28
      $region27: #{tpu_custom_call.1} parent=11 // pred_region
        _
      $region28: #{tpu_custom_call.1} parent=11 // pred_fallthru
        _
      // Predicated region
      $region29: #{tpu_custom_call.1} parent=11 // pred_check
        %p289 = pneg %p173
      $region30: #{tpu_custom_call.1} parent=11 // pred_check_branch
        %291 = sbr.rel (%p289) target = $region32
      $region31: #{tpu_custom_call.1} parent=11 // pred_region
        _
      $region32: #{tpu_custom_call.1} parent=11 // pred_fallthru
        _
      // Predicated region
      $region33: #{tpu_custom_call.1} parent=11 // pred_check
        %p292 = pneg %p194
      $region34: #{tpu_custom_call.1} parent=11 // pred_check_branch
        %294 = sbr.rel (%p292) target = $region36
      $region35: #{tpu_custom_call.1} parent=11 // pred_region
        _
      $region36: #{tpu_custom_call.1} parent=11 // pred_fallthru
        _
      // Predicated region
      $region37: #{tpu_custom_call.1} parent=11 // pred_check
        %p295 = pneg %p215
      $region38: #{tpu_custom_call.1} parent=11 // pred_check_branch
        %297 = sbr.rel (%p295) target = $region40
      $region39: #{tpu_custom_call.1} parent=11 // pred_region
        _
      $region40: #{tpu_custom_call.1} parent=11 // pred_fallthru
        _
      // Predicated region
      $region41: #{tpu_custom_call.1} parent=11 // pred_check
        %p298 = pneg %p236
      $region42: #{tpu_custom_call.1} parent=11 // pred_check_branch
        %300 = sbr.rel (%p298) target = $region44
      $region43: #{tpu_custom_call.1} parent=11 // pred_region
        _
      $region44: #{tpu_custom_call.1} parent=11 // pred_fallthru
        _
    $region12: #{tpu_custom_call.1} parent=5 // pred_fallthru
      _
    %p301 = scmp.lt.s32.totalorder %s16, 2
    // Predicated region
    $region45: #{tpu_custom_call.1} parent=5 // pred_check
      %p302 = pneg %p301
    $region46: #{tpu_custom_call.1} parent=5 // pred_check_branch
      %304 = sbr.rel (%p302) target = $region48
    $region47: #{tpu_custom_call.1} parent=5 // pred_region
      // Predicated region
      $region49: #{tpu_custom_call.1} parent=47 // pred_check
        %p305 = pneg %p36
      $region50: #{tpu_custom_call.1} parent=47 // pred_check_branch
        %307 = sbr.rel (%p305) target = $region52
      $region51: #{tpu_custom_call.1} parent=47 // pred_region
        %p308 = scmp.lt.s32.totalorder %s16, 1
        %s309 = scalar_select %p308, %s16, 1
        %s310 = smul.addr %s309, 4
        %s311 = scalar_lea.vmem %s0, %s310
      $region52: #{tpu_custom_call.1} parent=47 // pred_fallthru
        _
      // Predicated region
      $region53: #{tpu_custom_call.1} parent=47 // pred_check
        %p312 = pneg %p62
      $region54: #{tpu_custom_call.1} parent=47 // pred_check_branch
        %314 = sbr.rel (%p312) target = $region56
      $region55: #{tpu_custom_call.1} parent=47 // pred_region
        %p315 = scmp.lt.s32.totalorder %s16, 1
        %s316 = scalar_select %p315, %s16, 1
        %s317 = smul.addr %s316, 4
        %s318 = scalar_lea.vmem %s1, %s317
      $region56: #{tpu_custom_call.1} parent=47 // pred_fallthru
        _
    $region48: #{tpu_custom_call.1} parent=5 // pred_fallthru
      _
    %p319 = scmp.le.s32.totalorder 1, %s16
    %p320 = scmp.lt.s32.totalorder %s16, 3
    %p321 = pnand %p319, %p320
    %p322 = pneg %p321
    // Predicated region
    $region57: #{tpu_custom_call.1} parent=5 // pred_check
      _
    $region58: #{tpu_custom_call.1} parent=5 // pred_check_branch
      %324 = sbr.rel (%p321) target = $region60
    $region59: #{tpu_custom_call.1} parent=5 // pred_region
      %s325 = ssub.s32 %s16, 1
      %p326 = scmp.lt.s32.totalorder %s21, 1
      %s327 = scalar_select %p326, %s21, 1
      %s328 = smul.addr %s327, 4
      %s329 = scalar_lea.vmem %s0, %s328
      %p330 = pneg %p42
      %p331 = pneg %p39
      %p332 = scmp.lt.s32.totalorder %s21, 1
      %s333 = scalar_select %p332, %s21, 1
      %s334 = smul.addr %s333, 4
      %s335 = scalar_lea.vmem %s1, %s334
      %p336 = pneg %p68
      %p337 = pneg %p65
      %p338 = pneg %p89
      %p339 = pneg %p86
      %p340 = pneg %p110
      %p341 = pneg %p107
      %p342 = pneg %p131
      %p343 = pneg %p128
      %p344 = pneg %p152
      %p345 = pneg %p149
      %p346 = pneg %p173
      %p347 = pneg %p170
      %p348 = pneg %p194
      %p349 = pneg %p191
      %p350 = pneg %p215
      %p351 = pneg %p212
      %p352 = pneg %p236
      %p353 = pneg %p233
      %p354 = pneg %p262
      %p355 = pneg %p259
      %p356 = scmp.lt.s32.totalorder %s21, 1
      %s357 = scalar_select %p356, %s21, 1
      %s358 = scalar_lea.vmem %s10, %s357
      %p359 = scmp.lt.s32.totalorder %s21, 1
      %s360 = scalar_select %p359, %s21, 1
      %s361 = smul.addr %s360, 4
      %s362 = scalar_lea.vmem %s0, %s361
      %p363 = scmp.lt.s32.totalorder %s21, 1
      %s364 = scalar_select %p363, %s21, 1
      %s365 = smul.addr %s364, 4
      %s366 = scalar_lea.vmem %s1, %s365
      %p367 = scmp.lt.s32.totalorder %s21, 1
      %s368 = scalar_select %p367, %s21, 1
      %s369 = scalar_lea.vmem %s10, %s368
      %v371 = vld [vmem:[%s362] sm:$0xf]
      %v372 = vld [vmem:[%s366] sm:$0xf]
      %v373 = vunpack.c.l.bf16 %v371
      %v374 = vunpack.c.l.bf16 %v372
      %v375 = vld [vmem:[%s2] sm:$0xf]
      %v376 = vld [vmem:[%s2 + $0x4] sm:$0xf]
      %v377 = vld [vmem:[%s2 + $0x8] sm:$0xf]
      %v378 = vld [vmem:[%s2 + $0xc] sm:$0xf]
      %v379 = vld [vmem:[%s2 + $0x10] sm:$0xf]
      %v380 = vld [vmem:[%s2 + $0x14] sm:$0xf]
      %v381 = vld [vmem:[%s2 + $0x18] sm:$0xf]
      %v382 = vld [vmem:[%s2 + $0x1c] sm:$0xf]
      %v383 = vld [vmem:[%s3] sm:$0x1]
      %v385 = vlaneseq
      %v386 = vshrl.u32 %v385, 7
      %v387 = vsub.s32 0, %v386
      %v388 = vrot.slane %v383, %v387
      %v398 = vunpack.c.l.b16 %v375
      %v399 = vunpack.c.l.b16 %v376
      %v400 = vunpack.c.l.b16 %v377
      %v401 = vunpack.c.l.b16 %v378
      %v402 = vunpack.c.l.b16 %v379
      %v403 = vunpack.c.l.b16 %v380
      %v404 = vunpack.c.l.b16 %v381
      %v405 = vunpack.c.l.b16 %v382
      %v406 = vpack.c.b16 %v399, %v398
      %v407 = vpack.c.b16 %v401, %v400
      %v408 = vpack.c.b16 %v403, %v402
      %v409 = vpack.c.b16 %v405, %v404
      %vm414 = vcmask 523264
      %v416 = vsel %vm414, %v371, 0
      %418 = vmatprep.subr.bf16.mxu0 0
      %419 = vmatpush1.bf16.msra.mxu0 0
      %420 = vmatprep.subr.bf16.mxu0 0
      %421 = vmatpush1.bf16.msra.mxu0 0
      %422 = vmatprep.subr.bf16.mxu0 0
      %423 = vmatpush1.bf16.msra.mxu0 0
      %424 = vmatprep.subr.bf16.mxu0 0
      %425 = vmatpush1.bf16.msra.mxu0 0
      %426 = vmatprep.subr.bf16.mxu0 0
      %427 = vmatpush1.bf16.msra.mxu0 %v409
      %428 = vmatprep.subr.bf16.mxu0 0
      %429 = vmatpush1.bf16.msra.mxu0 %v408
      %430 = vmatprep.subr.bf16.mxu0 0
      %431 = vmatpush1.bf16.msra.mxu0 %v407
      %432 = vmatprep.subr.bf16.mxu0 0
      %433 = vmatpush1.bf16.msra.mxu0 %v406
      %434 = vmatprep.subr.bf16.mxu0 0
      %435 = vmatpush2.bf16.msra.mxu0 0
      %436 = vmatprep.subr.bf16.mxu0 0
      %437 = vmatpush2.bf16.msra.mxu0 0
      %438 = vmatprep.subr.bf16.mxu0 0
      %439 = vmatpush2.bf16.msra.mxu0 0
      %440 = vmatprep.subr.bf16.mxu0 0
      %441 = vmatpush2.bf16.msra.mxu0 0
      %442 = vmatprep.subr.bf16.mxu0 0
      %443 = vmatpush2.bf16.msra.mxu0 0
      %444 = vmatprep.subr.bf16.mxu0 0
      %445 = vmatpush2.bf16.msra.mxu0 0
      %446 = vmatprep.subr.bf16.mxu0 0
      %447 = vmatpush2.bf16.msra.mxu0 0
      %448 = vmatprep.subr.bf16.mxu0 0
      %449 = vmatpush2.bf16.msra.mxu0 0
      %450 = vmatprep.mubr.bf16.mxu0 0
      %451 = vmatmul.mubr.bf16.gmra.mxu0 %v416
      %v452 = vpop.f32.mrf.mxu0
      %v453 = vadd.f32 %v388, %v452
      %v454 = vpop.f32.mrf.mxu0
      %v455 = vpop.f32.mrf.mxu0
      %v456 = vpop.f32.mrf.mxu0
      %457 = vdwg.mxu0
      %v458 = vtanh.pop %v453
      %v459 = vpack.c.bf16 %v458, %v458
      %v460 = vld [vmem:[%s4] sm:$0xf]
      %v461 = vld [vmem:[%s4 + $0x4] sm:$0xf]
      %v462 = vld [vmem:[%s4 + $0x8] sm:$0xf]
      %v463 = vld [vmem:[%s4 + $0xc] sm:$0xf]
      %v464 = vld [vmem:[%s5] sm:$0x1]
      %v466 = vlaneseq
      %v467 = vshrl.u32 %v466, 7
      %v468 = vsub.s32 0, %v467
      %v469 = vrot.slane %v464, %v468
      %v475 = vunpack.c.l.b16 %v460
      %v476 = vunpack.c.l.b16 %v461
      %v477 = vunpack.c.l.b16 %v462
      %v478 = vunpack.c.l.b16 %v463
      %v479 = vpack.c.b16 %v476, %v475
      %v480 = vpack.c.b16 %v478, %v477
      %vm483 = vcmask 261120
      %v485 = vsel %vm483, %v459, 0
      %487 = vmatprep.subr.bf16.mxu0 0
      %488 = vmatpush1.bf16.msra.mxu0 0
      %489 = vmatprep.subr.bf16.mxu0 0
      %490 = vmatpush1.bf16.msra.mxu0 0
      %491 = vmatprep.subr.bf16.mxu0 0
      %492 = vmatpush1.bf16.msra.mxu0 0
      %493 = vmatprep.subr.bf16.mxu0 0
      %494 = vmatpush1.bf16.msra.mxu0 0
      %495 = vmatprep.subr.bf16.mxu0 0
      %496 = vmatpush1.bf16.msra.mxu0 0
      %497 = vmatprep.subr.bf16.mxu0 0
      %498 = vmatpush1.bf16.msra.mxu0 0
      %499 = vmatprep.subr.bf16.mxu0 0
      %500 = vmatpush1.bf16.msra.mxu0 %v480
      %501 = vmatprep.subr.bf16.mxu0 0
      %502 = vmatpush1.bf16.msra.mxu0 %v479
      %503 = vmatprep.subr.bf16.mxu0 0
      %504 = vmatpush2.bf16.msra.mxu0 0
      %505 = vmatprep.subr.bf16.mxu0 0
      %506 = vmatpush2.bf16.msra.mxu0 0
      %507 = vmatprep.subr.bf16.mxu0 0
      %508 = vmatpush2.bf16.msra.mxu0 0
      %509 = vmatprep.subr.bf16.mxu0 0
      %510 = vmatpush2.bf16.msra.mxu0 0
      %511 = vmatprep.subr.bf16.mxu0 0
      %512 = vmatpush2.bf16.msra.mxu0 0
      %513 = vmatprep.subr.bf16.mxu0 0
      %514 = vmatpush2.bf16.msra.mxu0 0
      %515 = vmatprep.subr.bf16.mxu0 0
      %516 = vmatpush2.bf16.msra.mxu0 0
      %517 = vmatprep.subr.bf16.mxu0 0
      %518 = vmatpush2.bf16.msra.mxu0 0
      %519 = vmatprep.mubr.bf16.mxu0 0
      %520 = vmatmul.mubr.bf16.gmra.mxu0 %v485
      %v521 = vpop.f32.mrf.mxu0
      %v522 = vadd.f32 %v469, %v521
      %v523 = vpop.f32.mrf.mxu0
      %v524 = vpop.f32.mrf.mxu0
      %v525 = vpop.f32.mrf.mxu0
      %526 = vdwg.mxu0
      %v527 = vmul.f32 %v522, 0.5
      %v528 = vmul.f32 %v527, 1.442695
      %v529 = vpow.pop %v528
      %531 = vrot.lane.b32.xlu0 %v374, 8
      %v532 = vpop.permute.xlu0 %531
      %v534 = vmul.f32 %v529, %v532
      %536 = vrot.lane.b32.xlu0 %v534, 120
      %v537 = vpop.permute.xlu0 %536
      %v539 = vadd.f32 %v522, %v537
      %v540 = vpack.c.bf16 %v539, %v539
      %v541 = vld [vmem:[%s6] sm:$0xf]
      %v542 = vld [vmem:[%s7] sm:$0x1]
      %v544 = vlaneseq
      %v545 = vshrl.u32 %v544, 7
      %v546 = vsub.s32 0, %v545
      %v547 = vrot.slane %v542, %v546
      %vm549 = vcmask 64512
      %v551 = vsel %vm549, %v540, 0
      %vm553 = vcmask 1043456
      %v555 = vsel %vm553, %v541, 0
      %557 = vmatprep.subr.bf16.mxu0 0
      %558 = vmatpush1.bf16.msra.mxu0 0
      %559 = vmatprep.subr.bf16.mxu0 0
      %560 = vmatpush1.bf16.msra.mxu0 0
      %561 = vmatprep.subr.bf16.mxu0 0
      %562 = vmatpush1.bf16.msra.mxu0 0
      %563 = vmatprep.subr.bf16.mxu0 0
      %564 = vmatpush1.bf16.msra.mxu0 0
      %565 = vmatprep.subr.bf16.mxu0 0
      %566 = vmatpush1.bf16.msra.mxu0 0
      %567 = vmatprep.subr.bf16.mxu0 0
      %568 = vmatpush1.bf16.msra.mxu0 0
      %569 = vmatprep.subr.bf16.mxu0 0
      %570 = vmatpush1.bf16.msra.mxu0 0
      %571 = vmatprep.subr.bf16.mxu0 0
      %572 = vmatpush1.bf16.msra.mxu0 %v555
      %573 = vmatprep.subr.bf16.mxu0 0
      %574 = vmatpush2.bf16.msra.mxu0 0
      %575 = vmatprep.subr.bf16.mxu0 0
      %576 = vmatpush2.bf16.msra.mxu0 0
      %577 = vmatprep.subr.bf16.mxu0 0
      %578 = vmatpush2.bf16.msra.mxu0 0
      %579 = vmatprep.subr.bf16.mxu0 0
      %580 = vmatpush2.bf16.msra.mxu0 0
      %581 = vmatprep.subr.bf16.mxu0 0
      %582 = vmatpush2.bf16.msra.mxu0 0
      %583 = vmatprep.subr.bf16.mxu0 0
      %584 = vmatpush2.bf16.msra.mxu0 0
      %585 = vmatprep.subr.bf16.mxu0 0
      %586 = vmatpush2.bf16.msra.mxu0 0
      %587 = vmatprep.subr.bf16.mxu0 0
      %588 = vmatpush2.bf16.msra.mxu0 0
      %589 = vmatprep.mubr.bf16.mxu0 0
      %590 = vmatmul.mubr.bf16.gmra.mxu0 %v551
      %v591 = vpop.f32.mrf.mxu0
      %v592 = vadd.f32 %v547, %v591
      %v593 = vpop.f32.mrf.mxu0
      %v594 = vpop.f32.mrf.mxu0
      %v595 = vpop.f32.mrf.mxu0
      %596 = vdwg.mxu0
      %v597 = vtanh.pop %v592
      %v598 = vpack.c.bf16 %v597, %v597
      %v599 = vld [vmem:[%s8] sm:$0xf]
      %v600 = vld [vmem:[%s8 + $0x4] sm:$0xf]
      %v601 = vld [vmem:[%s8 + $0x8] sm:$0xf]
      %v602 = vld [vmem:[%s8 + $0xc] sm:$0xf]
      %v603 = vld [vmem:[%s9] sm:$0x1]
      %v605 = vlaneseq
      %v606 = vshrl.u32 %v605, 7
      %v607 = vsub.s32 0, %v606
      %v608 = vrot.slane %v603, %v607
      %v614 = vunpack.c.l.b16 %v599
      %v615 = vunpack.c.l.b16 %v600
      %v616 = vunpack.c.l.b16 %v601
      %v617 = vunpack.c.l.b16 %v602
      %v618 = vpack.c.b16 %v615, %v614
      %v619 = vpack.c.b16 %v617, %v616
      %v623 = vsel %vm483, %v598, 0
      %625 = vmatprep.subr.bf16.mxu0 0
      %626 = vmatpush1.bf16.msra.mxu0 0
      %627 = vmatprep.subr.bf16.mxu0 0
      %628 = vmatpush1.bf16.msra.mxu0 0
      %629 = vmatprep.subr.bf16.mxu0 0
      %630 = vmatpush1.bf16.msra.mxu0 0
      %631 = vmatprep.subr.bf16.mxu0 0
      %632 = vmatpush1.bf16.msra.mxu0 0
      %633 = vmatprep.subr.bf16.mxu0 0
      %634 = vmatpush1.bf16.msra.mxu0 0
      %635 = vmatprep.subr.bf16.mxu0 0
      %636 = vmatpush1.bf16.msra.mxu0 0
      %637 = vmatprep.subr.bf16.mxu0 0
      %638 = vmatpush1.bf16.msra.mxu0 %v619
      %639 = vmatprep.subr.bf16.mxu0 0
      %640 = vmatpush1.bf16.msra.mxu0 %v618
      %641 = vmatprep.subr.bf16.mxu0 0
      %642 = vmatpush2.bf16.msra.mxu0 0
      %643 = vmatprep.subr.bf16.mxu0 0
      %644 = vmatpush2.bf16.msra.mxu0 0
      %645 = vmatprep.subr.bf16.mxu0 0
      %646 = vmatpush2.bf16.msra.mxu0 0
      %647 = vmatprep.subr.bf16.mxu0 0
      %648 = vmatpush2.bf16.msra.mxu0 0
      %649 = vmatprep.subr.bf16.mxu0 0
      %650 = vmatpush2.bf16.msra.mxu0 0
      %651 = vmatprep.subr.bf16.mxu0 0
      %652 = vmatpush2.bf16.msra.mxu0 0
      %653 = vmatprep.subr.bf16.mxu0 0
      %654 = vmatpush2.bf16.msra.mxu0 0
      %655 = vmatprep.subr.bf16.mxu0 0
      %656 = vmatpush2.bf16.msra.mxu0 0
      %657 = vmatprep.mubr.bf16.mxu0 0
      %658 = vmatmul.mubr.bf16.gmra.mxu0 %v623
      %v659 = vpop.f32.mrf.mxu0
      %v660 = vadd.f32 %v608, %v659
      %v661 = vpop.f32.mrf.mxu0
      %v662 = vpop.f32.mrf.mxu0
      %v663 = vpop.f32.mrf.mxu0
      %664 = vdwg.mxu0
      %v665 = vxor.u32 %v660, 2147483648
      %v666 = vmul.f32 %v665, 1.442695
      %v667 = vpow.pop %v666
      %v668 = vadd.f32 %v667, 1.0
      %v669 = vrcp.pop %v668
      %v670 = vmul.f32 1.0, %v669
      %v671 = vsub.f32 %v373, %v670
      %v672 = vmul.f32 %v671, %v671
      %v673 = vsub.f32 0.0, %v660
      %v674 = vmul.f32 %v673, 1.442695
      %v675 = vpow.pop %v674
      %677 = vrot.lane.b32.xlu0 %v675, 64
      %v678 = vpop.permute.xlu0 %677
      %v680 = vmul.f32 %v672, %v678
      %682 = vrot.lane.b32.xlu0 %v680, 64
      %v683 = vpop.permute.xlu0 %682
      %v685 = vadd.f32 %v660, %v683
      %v686 = vmul.f32 %v685, -0.5
      %v687 = vmul.f32 %v522, %v522
      %689 = vrot.lane.b32.xlu0 %v687, 8
      %v690 = vpop.permute.xlu0 %689
      %v692 = vsub.f32 %v522, %v690
      %v693 = vmul.f32 %v529, %v529
      %v694 = vsub.f32 %v692, %v693
      %696 = vrot.lane.b32.xlu0 %v686, 64
      %v697 = vpop.permute.xlu0 %696
      %v699 = vsel %vm414, %v697, 0.0
      %700 = vadd.xlane.f32.xlu0 %v699
      %v701 = vpop.xlane.xlu0 %700
      %v702 = vrot.slane %v701, 4
      %v703 = vadd.f32 %v701, %v702
      %v704 = vrot.slane %v703, 2
      %v705 = vadd.f32 %v703, %v704
      %v706 = vrot.slane %v705, 1
      %v707 = vadd.f32 %v705, %v706
      %s708 = vtos %v707
      %v709 = vstv %s708
      %711 = vrot.lane.b32.xlu0 %v694, 120
      %v712 = vpop.permute.xlu0 %711
      %v714 = vsel %vm549, %v712, 0.0
      %715 = vadd.xlane.f32.xlu0 %v714
      %v716 = vpop.xlane.xlu0 %715
      %v717 = vrot.slane %v716, 4
      %v718 = vadd.f32 %v716, %v717
      %v719 = vrot.slane %v718, 2
      %v720 = vadd.f32 %v718, %v719
      %v721 = vrot.slane %v720, 1
      %v722 = vadd.f32 %v720, %v721
      %s723 = vtos %v722
      %v724 = vstv %s723
      %v725 = vmul.f32 %v724, 0.5
      %v726 = vadd.f32 %v709, %v725
      %v727 = vadd.f32 %v726, -438.49652
      %vm728 = vcmask 0
      %729 = vst.msk [vmem:[%s369] sm:$0x1] %vm728, %v727
      %p730 = scmp.lt.s32.totalorder %s21, 1
      %s731 = scalar_select %p730, %s21, 1
      %s732 = scalar_lea.vmem %s10, %s731
      // Predicated region
      $region61: #{tpu_custom_call.1} parent=59 // pred_check
        %p733 = pneg %p259
      $region62: #{tpu_custom_call.1} parent=59 // pred_check_branch
        %735 = sbr.rel (%p733) target = $region64
      $region63: #{tpu_custom_call.1} parent=59 // pred_region
        _
      $region64: #{tpu_custom_call.1} parent=59 // pred_fallthru
        _
    $region60: #{tpu_custom_call.1} parent=5 // pred_fallthru
      _
    %p736 = scmp.le.s32.totalorder 2, %s16
    // Predicated region
    $region65: #{tpu_custom_call.1} parent=5 // pred_check
      %p737 = pneg %p736
    $region66: #{tpu_custom_call.1} parent=5 // pred_check_branch
      %739 = sbr.rel (%p737) target = $region68
    $region67: #{tpu_custom_call.1} parent=5 // pred_region
      %s740 = ssub.s32 %s16, 2
      // Predicated region
      $region69: #{tpu_custom_call.1} parent=67 // pred_check
        %p741 = pneg %p265
      $region70: #{tpu_custom_call.1} parent=67 // pred_check_branch
        %743 = sbr.rel (%p741) target = $region72
      $region71: #{tpu_custom_call.1} parent=67 // pred_region
        %p744 = scmp.lt.s32.totalorder %s22, 1
        %s745 = scalar_select %p744, %s22, 1
        %s746 = scalar_lea.vmem %s10, %s745
      $region72: #{tpu_custom_call.1} parent=67 // pred_fallthru
        _
    $region68: #{tpu_custom_call.1} parent=5 // pred_fallthru
      _
  $region6: #{tpu_custom_call.1} parent=0 // loop_footer
    %s20 = sadd.s32 1, %s16
  $region7: #{tpu_custom_call.1} parent=0 // loop_footer_branch
    %15 = sbr.rel target = $region3
  $region8: #{tpu_custom_call.1} parent=0 // loop_exit
    _

</llo_original>
